<compile_context>
chip_gen: v7x
topology: tpu7x:2x2x1
jax: 0.10.0
libtpu: 0.0.40
codegen_flags: <defaults>
</compile_context>

<pallas_src>
import jax
import jax.numpy as jnp
from jax.experimental import pallas as pl
from jax.experimental.pallas import tpu as pltpu


def _softplus(z):
    # PyTorch nn.Softplus(beta=1, threshold=20): linear above the threshold.
    return jnp.where(z > 20.0, z, jnp.log1p(jnp.exp(jnp.minimum(z, 20.0))))


def _encoder_kernel(x_ref,
                    w1_ref, b1_ref,
                    w2_ref, b2_ref,
                    wmu_ref, bmu_ref, mu_sc_ref, mu_sh_ref,
                    wlv_ref, blv_ref, lv_sc_ref, lv_sh_ref,
                    mu_ref, lv_ref):
    # x_ref: (TB, V) tile of the batch; everything else is a full-extent block.
    x = x_ref[...]
    h1 = _softplus(
        jnp.dot(x, w1_ref[...], preferred_element_type=jnp.float32) + b1_ref[...])
    h2 = _softplus(
        jnp.dot(h1, w2_ref[...], preferred_element_type=jnp.float32) + b2_ref[...])
    # Dropout: eval-mode identity.
    zmu = jnp.dot(h2, wmu_ref[...], preferred_element_type=jnp.float32) + bmu_ref[...]
    zlv = jnp.dot(h2, wlv_ref[...], preferred_element_type=jnp.float32) + blv_ref[...]
    # Eval-mode BatchNorm1d folded into per-feature affine (scale, shift).
    mu_ref[...] = zmu * mu_sc_ref[...] + mu_sh_ref[...]
    lv_ref[...] = zlv * lv_sc_ref[...] + lv_sh_ref[...]


def _round_up(x, m):
    return ((x + m - 1) // m) * m


def _choose_block_b(batch, vocab):
    """Largest multiple of 8 <= 1024 whose double-buffered x tile fits a ~16 MiB budget."""
    budget = 16 * 1024 * 1024          # keeps v7x (64 MiB physical VMEM) comfortable
    tb = min(1024, _round_up(batch, 8))
    tb = max(8, (tb // 8) * 8)
    while tb > 8 and 2 * tb * vocab * 4 > budget:
        tb -= 8
    return tb


def encoder_forward(x, params, *, eps=1e-3, block_b=None):
    """x: (B, vocab) f32 -> (mu, logvar), each (B, topics) f32. Eval-mode forward."""
    x = x.astype(jnp.float32)
    B, V = x.shape
    W1, b1 = params["W1"], params["b1"]
    W2, b2 = params["W2"], params["b2"]
    Wmu, bmu = params["Wmu"], params["bmu"]
    Wlv, blv = params["Wlv"], params["blv"]
    H1, H2, T = W1.shape[1], W2.shape[1], Wmu.shape[1]

    # Fold eval-mode BatchNorm1d into a per-feature affine: y = z*scale + shift.
    def fold_bn(gamma, beta, mean, var):
        scale = gamma / jnp.sqrt(var + eps)
        shift = beta - mean * scale
        return scale, shift

    mu_sc, mu_sh = fold_bn(params["mu_gamma"], params["mu_beta"],
                           params["mu_mean"], params["mu_var"])
    lv_sc, lv_sh = fold_bn(params["lv_gamma"], params["lv_beta"],
                           params["lv_mean"], params["lv_var"])

    if block_b is None:
        block_b = _choose_block_b(B, V)
    B_pad = _round_up(B, block_b)
    if B_pad != B:
        x = jnp.pad(x, ((0, B_pad - B), (0, 0)))
    grid = (pl.cdiv(B_pad, block_b),)

    def row(v):   # 1-D parameter -> lane-dense (1, N) row
        return v.reshape(1, -1).astype(jnp.float32)

    def const2(shape):   # full-extent block, constant block index (stays resident)
        return pl.BlockSpec(shape, lambda i: (0, 0))

    in_specs = [
        pl.BlockSpec((block_b, V), lambda i: (i, 0)),       # x batch tile
        const2((V, H1)), const2((1, H1)),                   # W1, b1
        const2((H1, H2)), const2((1, H2)),                  # W2, b2
        const2((H2, T)), const2((1, T)), const2((1, T)), const2((1, T)),  # mu head
        const2((H2, T)), const2((1, T)), const2((1, T)), const2((1, T)),  # logvar head
    ]
    out_specs = (
        pl.BlockSpec((block_b, T), lambda i: (i, 0)),
        pl.BlockSpec((block_b, T), lambda i: (i, 0)),
    )
    out_shape = (
        jax.ShapeDtypeStruct((B_pad, T), jnp.float32),
        jax.ShapeDtypeStruct((B_pad, T), jnp.float32),
    )

    # VMEM estimate: double-buffered x + double-buffered outputs + params + temps.
    f32 = 4
    est = (2 * block_b * V
           + 2 * 2 * block_b * T
           + 2 * (V * H1 + H1 * H2 + 2 * H2 * T + H1 + H2 + 6 * T)
           + block_b * (H1 + H2 + 2 * T)) * f32
    vmem_limit = int(min(max(2 * est, 32 * 1024 * 1024), 96 * 1024 * 1024))

    mu, logvar = pl.pallas_call(
        _encoder_kernel,
        grid=grid,
        in_specs=in_specs,
        out_specs=out_specs,
        out_shape=out_shape,
        compiler_params=pltpu.CompilerParams(
            dimension_semantics=("parallel",),
            vmem_limit_bytes=vmem_limit,
        ),
    )(
        x,
        W1.astype(jnp.float32), row(b1),
        W2.astype(jnp.float32), row(b2),
        Wmu.astype(jnp.float32), row(bmu), row(mu_sc), row(mu_sh),
        Wlv.astype(jnp.float32), row(blv), row(lv_sc), row(lv_sh),
    )
    return mu[:B], logvar[:B]


if __name__ == "__main__":
    key = jax.random.PRNGKey(0)
    ks = jax.random.split(key, 10)

    vocab, hidden1, hidden2, topics = 64, 48, 32, 16
    batch = 10                 # deliberately not a multiple of 8 -> exercises padding
    eps = 1e-3

    def lin_init(kw, kb, fan_in, fan_out):
        bound = 1.0 / (fan_in ** 0.5)
        W = jax.random.uniform(kw, (fan_in, fan_out), jnp.float32, -bound, bound)
        b = jax.random.uniform(kb, (fan_out,), jnp.float32, -bound, bound)
        return W, b

    W1, b1 = lin_init(ks[0], ks[1], vocab, hidden1)
    W2, b2 = lin_init(ks[2], ks[3], hidden1, hidden2)
    Wmu, bmu = lin_init(ks[4], ks[5], hidden2, topics)
    Wlv, blv = lin_init(ks[6], ks[7], hidden2, topics)

    # BatchNorm1d(affine=True) weights + (non-trivial) running stats, eval mode.
    params = dict(
        W1=W1, b1=b1, W2=W2, b2=b2, Wmu=Wmu, bmu=bmu, Wlv=Wlv, blv=blv,
        mu_gamma=jnp.full((topics,), 1.10, jnp.float32),
        mu_beta=jnp.full((topics,), 0.05, jnp.float32),
        mu_mean=jnp.full((topics,), 0.02, jnp.float32),
        mu_var=jnp.full((topics,), 0.90, jnp.float32),
        lv_gamma=jnp.full((topics,), 0.95, jnp.float32),
        lv_beta=jnp.full((topics,), -0.05, jnp.float32),
        lv_mean=jnp.full((topics,), -0.01, jnp.float32),
        lv_var=jnp.full((topics,), 1.05, jnp.float32),
    )

    x = jax.random.uniform(ks[8], (batch, vocab), dtype=jnp.float32)

    mu, logvar = encoder_forward(x, params, eps=eps)
    (mu, logvar) = jax.block_until_ready((mu, logvar))

    # Pure-JAX reference (eval mode: dropout=identity, BN uses running stats).
    def ref_softplus(z):
        return jnp.where(z > 20.0, z, jnp.log1p(jnp.exp(jnp.minimum(z, 20.0))))

    h1 = ref_softplus(x @ W1 + b1)
    h2 = ref_softplus(h1 @ W2 + b2)
    zmu = h2 @ Wmu + bmu
    zlv = h2 @ Wlv + blv
    mu_ref = ((zmu - params["mu_mean"]) / jnp.sqrt(params["mu_var"] + eps)
              * params["mu_gamma"] + params["mu_beta"])
    lv_ref = ((zlv - params["lv_mean"]) / jnp.sqrt(params["lv_var"] + eps)
              * params["lv_gamma"] + params["lv_beta"])

    assert mu.shape == (batch, topics) and logvar.shape == (batch, topics)
    assert jnp.allclose(mu, mu_ref, atol=1e-5, rtol=1e-5), (mu, mu_ref)
    assert jnp.allclose(logvar, lv_ref, atol=1e-5, rtol=1e-5), (logvar, lv_ref)

    print("KERNEL_OK")
</pallas_src>

<mosaic_0001>
module attributes {stable_mosaic.version = 11 : i64} {
  func.func @_encoder_kernel(%arg0: i32, %arg1: memref<16x64xf32, #tpu.memory_space<vmem>>, %arg2: memref<64x48xf32, #tpu.memory_space<vmem>>, %arg3: memref<1x48xf32, #tpu.memory_space<vmem>>, %arg4: memref<48x32xf32, #tpu.memory_space<vmem>>, %arg5: memref<1x32xf32, #tpu.memory_space<vmem>>, %arg6: memref<32x16xf32, #tpu.memory_space<vmem>>, %arg7: memref<1x16xf32, #tpu.memory_space<vmem>>, %arg8: memref<1x16xf32, #tpu.memory_space<vmem>>, %arg9: memref<1x16xf32, #tpu.memory_space<vmem>>, %arg10: memref<32x16xf32, #tpu.memory_space<vmem>>, %arg11: memref<1x16xf32, #tpu.memory_space<vmem>>, %arg12: memref<1x16xf32, #tpu.memory_space<vmem>>, %arg13: memref<1x16xf32, #tpu.memory_space<vmem>>, %arg14: memref<16x16xf32, #tpu.memory_space<vmem>>, %arg15: memref<16x16xf32, #tpu.memory_space<vmem>>) attributes {dimension_semantics = [#tpu.dimension_semantics<parallel>], iteration_bounds = array<i64: 1>, scalar_prefetch = 0 : i64, scratch_operands = 0 : i64, tpu.core_type = #tpu.core_type<tc>, window_params = [{transform_indices = @transform_0, window_bounds = array<i64: 16, 64>}, {pipeline_mode = #tpu.pipeline_mode<synchronous>, transform_indices = @transform_1, window_bounds = array<i64: 64, 48>}, {pipeline_mode = #tpu.pipeline_mode<synchronous>, transform_indices = @transform_2, window_bounds = array<i64: 1, 48>}, {pipeline_mode = #tpu.pipeline_mode<synchronous>, transform_indices = @transform_3, window_bounds = array<i64: 48, 32>}, {pipeline_mode = #tpu.pipeline_mode<synchronous>, transform_indices = @transform_4, window_bounds = array<i64: 1, 32>}, {pipeline_mode = #tpu.pipeline_mode<synchronous>, transform_indices = @transform_5, window_bounds = array<i64: 32, 16>}, {pipeline_mode = #tpu.pipeline_mode<synchronous>, transform_indices = @transform_6, window_bounds = array<i64: 1, 16>}, {pipeline_mode = #tpu.pipeline_mode<synchronous>, transform_indices = @transform_7, window_bounds = array<i64: 1, 16>}, {pipeline_mode = #tpu.pipeline_mode<synchronous>, transform_indices = @transform_8, window_bounds = array<i64: 1, 16>}, {pipeline_mode = #tpu.pipeline_mode<synchronous>, transform_indices = @transform_9, window_bounds = array<i64: 32, 16>}, {pipeline_mode = #tpu.pipeline_mode<synchronous>, transform_indices = @transform_10, window_bounds = array<i64: 1, 16>}, {pipeline_mode = #tpu.pipeline_mode<synchronous>, transform_indices = @transform_11, window_bounds = array<i64: 1, 16>}, {pipeline_mode = #tpu.pipeline_mode<synchronous>, transform_indices = @transform_12, window_bounds = array<i64: 1, 16>}, {transform_indices = @transform_13, window_bounds = array<i64: 16, 16>}, {transform_indices = @transform_14, window_bounds = array<i64: 16, 16>}]} {
    %c0 = arith.constant 0 : index
    %c0_0 = arith.constant 0 : index
    %0 = vector.load %arg1[%c0, %c0_0] : memref<16x64xf32, #tpu.memory_space<vmem>>, vector<16x64xf32>
    %c0_1 = arith.constant 0 : index
    %c0_2 = arith.constant 0 : index
    %1 = vector.load %arg2[%c0_1, %c0_2] : memref<64x48xf32, #tpu.memory_space<vmem>>, vector<64x48xf32>
    %cst = arith.constant dense<0.000000e+00> : vector<16x48xf32>
    %2 = tpu.matmul %0, %1, %cst {dimension_numbers = #tpu.dot_dimension_numbers<[1], [0], [0], [1], [0, 0, 1, 1], [], []>} : vector<16x64xf32>, vector<64x48xf32>, vector<16x48xf32> -> vector<16x48xf32>
    %c0_3 = arith.constant 0 : index
    %c0_4 = arith.constant 0 : index
    %3 = vector.load %arg3[%c0_3, %c0_4] : memref<1x48xf32, #tpu.memory_space<vmem>>, vector<1x48xf32>
    %4 = vector.broadcast %3 : vector<1x48xf32> to vector<16x48xf32>
    %5 = arith.addf %2, %4 : vector<16x48xf32>
    %cst_5 = arith.constant 2.000000e+01 : f32
    %6 = vector.broadcast %cst_5 : f32 to vector<16x48xf32>
    %7 = arith.cmpf ogt, %5, %6 : vector<16x48xf32>
    %cst_6 = arith.constant 2.000000e+01 : f32
    %8 = vector.broadcast %cst_6 : f32 to vector<16x48xf32>
    %9 = arith.minimumf %5, %8 : vector<16x48xf32>
    %10 = math.exp %9 : vector<16x48xf32>
    %11 = math.log1p %10 : vector<16x48xf32>
    %12 = arith.select %7, %5, %11 : vector<16x48xi1>, vector<16x48xf32>
    %c0_7 = arith.constant 0 : index
    %c0_8 = arith.constant 0 : index
    %13 = vector.load %arg4[%c0_7, %c0_8] : memref<48x32xf32, #tpu.memory_space<vmem>>, vector<48x32xf32>
    %cst_9 = arith.constant dense<0.000000e+00> : vector<16x32xf32>
    %14 = tpu.matmul %12, %13, %cst_9 {dimension_numbers = #tpu.dot_dimension_numbers<[1], [0], [0], [1], [0, 0, 1, 1], [], []>} : vector<16x48xf32>, vector<48x32xf32>, vector<16x32xf32> -> vector<16x32xf32>
    %c0_10 = arith.constant 0 : index
    %c0_11 = arith.constant 0 : index
    %15 = vector.load %arg5[%c0_10, %c0_11] : memref<1x32xf32, #tpu.memory_space<vmem>>, vector<1x32xf32>
    %16 = vector.broadcast %15 : vector<1x32xf32> to vector<16x32xf32>
    %17 = arith.addf %14, %16 : vector<16x32xf32>
    %cst_12 = arith.constant 2.000000e+01 : f32
    %18 = vector.broadcast %cst_12 : f32 to vector<16x32xf32>
    %19 = arith.cmpf ogt, %17, %18 : vector<16x32xf32>
    %cst_13 = arith.constant 2.000000e+01 : f32
    %20 = vector.broadcast %cst_13 : f32 to vector<16x32xf32>
    %21 = arith.minimumf %17, %20 : vector<16x32xf32>
    %22 = math.exp %21 : vector<16x32xf32>
    %23 = math.log1p %22 : vector<16x32xf32>
    %24 = arith.select %19, %17, %23 : vector<16x32xi1>, vector<16x32xf32>
    %c0_14 = arith.constant 0 : index
    %c0_15 = arith.constant 0 : index
    %25 = vector.load %arg6[%c0_14, %c0_15] : memref<32x16xf32, #tpu.memory_space<vmem>>, vector<32x16xf32>
    %cst_16 = arith.constant dense<0.000000e+00> : vector<16x16xf32>
    %26 = tpu.matmul %24, %25, %cst_16 {dimension_numbers = #tpu.dot_dimension_numbers<[1], [0], [0], [1], [0, 0, 1, 1], [], []>} : vector<16x32xf32>, vector<32x16xf32>, vector<16x16xf32> -> vector<16x16xf32>
    %c0_17 = arith.constant 0 : index
    %c0_18 = arith.constant 0 : index
    %27 = vector.load %arg7[%c0_17, %c0_18] : memref<1x16xf32, #tpu.memory_space<vmem>>, vector<1x16xf32>
    %28 = vector.broadcast %27 : vector<1x16xf32> to vector<16x16xf32>
    %29 = arith.addf %26, %28 : vector<16x16xf32>
    %c0_19 = arith.constant 0 : index
    %c0_20 = arith.constant 0 : index
    %30 = vector.load %arg10[%c0_19, %c0_20] : memref<32x16xf32, #tpu.memory_space<vmem>>, vector<32x16xf32>
    %cst_21 = arith.constant dense<0.000000e+00> : vector<16x16xf32>
    %31 = tpu.matmul %24, %30, %cst_21 {dimension_numbers = #tpu.dot_dimension_numbers<[1], [0], [0], [1], [0, 0, 1, 1], [], []>} : vector<16x32xf32>, vector<32x16xf32>, vector<16x16xf32> -> vector<16x16xf32>
    %c0_22 = arith.constant 0 : index
    %c0_23 = arith.constant 0 : index
    %32 = vector.load %arg11[%c0_22, %c0_23] : memref<1x16xf32, #tpu.memory_space<vmem>>, vector<1x16xf32>
    %33 = vector.broadcast %32 : vector<1x16xf32> to vector<16x16xf32>
    %34 = arith.addf %31, %33 : vector<16x16xf32>
    %c0_24 = arith.constant 0 : index
    %c0_25 = arith.constant 0 : index
    %35 = vector.load %arg8[%c0_24, %c0_25] : memref<1x16xf32, #tpu.memory_space<vmem>>, vector<1x16xf32>
    %36 = vector.broadcast %35 : vector<1x16xf32> to vector<16x16xf32>
    %37 = arith.mulf %29, %36 : vector<16x16xf32>
    %c0_26 = arith.constant 0 : index
    %c0_27 = arith.constant 0 : index
    %38 = vector.load %arg9[%c0_26, %c0_27] : memref<1x16xf32, #tpu.memory_space<vmem>>, vector<1x16xf32>
    %39 = vector.broadcast %38 : vector<1x16xf32> to vector<16x16xf32>
    %40 = arith.addf %37, %39 : vector<16x16xf32>
    %c0_28 = arith.constant 0 : index
    %c0_29 = arith.constant 0 : index
    %41 = vector.load %arg14[%c0_28, %c0_29] : memref<16x16xf32, #tpu.memory_space<vmem>>, vector<16x16xf32>
    tpu.vector_store %arg14[%c0_28, %c0_29], %40 {strides = array<i32>} : memref<16x16xf32, #tpu.memory_space<vmem>>, vector<16x16xf32>,
    %c0_30 = arith.constant 0 : index
    %c0_31 = arith.constant 0 : index
    %42 = vector.load %arg12[%c0_30, %c0_31] : memref<1x16xf32, #tpu.memory_space<vmem>>, vector<1x16xf32>
    %43 = vector.broadcast %42 : vector<1x16xf32> to vector<16x16xf32>
    %44 = arith.mulf %34, %43 : vector<16x16xf32>
    %c0_32 = arith.constant 0 : index
    %c0_33 = arith.constant 0 : index
    %45 = vector.load %arg13[%c0_32, %c0_33] : memref<1x16xf32, #tpu.memory_space<vmem>>, vector<1x16xf32>
    %46 = vector.broadcast %45 : vector<1x16xf32> to vector<16x16xf32>
    %47 = arith.addf %44, %46 : vector<16x16xf32>
    %c0_34 = arith.constant 0 : index
    %c0_35 = arith.constant 0 : index
    %48 = vector.load %arg15[%c0_34, %c0_35] : memref<16x16xf32, #tpu.memory_space<vmem>>, vector<16x16xf32>
    tpu.vector_store %arg15[%c0_34, %c0_35], %47 {strides = array<i32>} : memref<16x16xf32, #tpu.memory_space<vmem>>, vector<16x16xf32>,
    return
  }
  func.func @transform_0(%arg0: i32) -> (i32, i32) {
    %c0_i32 = arith.constant 0 : i32
    %c0_i32_0 = arith.constant 0 : i32
    return %arg0, %c0_i32 : i32, i32
  }
  func.func @transform_1(%arg0: i32) -> (i32, i32) {
    %c0_i32 = arith.constant 0 : i32
    %c0_i32_0 = arith.constant 0 : i32
    %c0_i32_1 = arith.constant 0 : i32
    return %c0_i32, %c0_i32_0 : i32, i32
  }
  func.func @transform_2(%arg0: i32) -> (i32, i32) {
    %c0_i32 = arith.constant 0 : i32
    %c0_i32_0 = arith.constant 0 : i32
    %c0_i32_1 = arith.constant 0 : i32
    return %c0_i32, %c0_i32_0 : i32, i32
  }
  func.func @transform_3(%arg0: i32) -> (i32, i32) {
    %c0_i32 = arith.constant 0 : i32
    %c0_i32_0 = arith.constant 0 : i32
    %c0_i32_1 = arith.constant 0 : i32
    return %c0_i32, %c0_i32_0 : i32, i32
  }
  func.func @transform_4(%arg0: i32) -> (i32, i32) {
    %c0_i32 = arith.constant 0 : i32
    %c0_i32_0 = arith.constant 0 : i32
    %c0_i32_1 = arith.constant 0 : i32
    return %c0_i32, %c0_i32_0 : i32, i32
  }
  func.func @transform_5(%arg0: i32) -> (i32, i32) {
    %c0_i32 = arith.constant 0 : i32
    %c0_i32_0 = arith.constant 0 : i32
    %c0_i32_1 = arith.constant 0 : i32
    return %c0_i32, %c0_i32_0 : i32, i32
  }
  func.func @transform_6(%arg0: i32) -> (i32, i32) {
    %c0_i32 = arith.constant 0 : i32
    %c0_i32_0 = arith.constant 0 : i32
    %c0_i32_1 = arith.constant 0 : i32
    return %c0_i32, %c0_i32_0 : i32, i32
  }
  func.func @transform_7(%arg0: i32) -> (i32, i32) {
    %c0_i32 = arith.constant 0 : i32
    %c0_i32_0 = arith.constant 0 : i32
    %c0_i32_1 = arith.constant 0 : i32
    return %c0_i32, %c0_i32_0 : i32, i32
  }
  func.func @transform_8(%arg0: i32) -> (i32, i32) {
    %c0_i32 = arith.constant 0 : i32
    %c0_i32_0 = arith.constant 0 : i32
    %c0_i32_1 = arith.constant 0 : i32
    return %c0_i32, %c0_i32_0 : i32, i32
  }
  func.func @transform_9(%arg0: i32) -> (i32, i32) {
    %c0_i32 = arith.constant 0 : i32
    %c0_i32_0 = arith.constant 0 : i32
    %c0_i32_1 = arith.constant 0 : i32
    return %c0_i32, %c0_i32_0 : i32, i32
  }
  func.func @transform_10(%arg0: i32) -> (i32, i32) {
    %c0_i32 = arith.constant 0 : i32
    %c0_i32_0 = arith.constant 0 : i32
    %c0_i32_1 = arith.constant 0 : i32
    return %c0_i32, %c0_i32_0 : i32, i32
  }
  func.func @transform_11(%arg0: i32) -> (i32, i32) {
    %c0_i32 = arith.constant 0 : i32
    %c0_i32_0 = arith.constant 0 : i32
    %c0_i32_1 = arith.constant 0 : i32
    return %c0_i32, %c0_i32_0 : i32, i32
  }
  func.func @transform_12(%arg0: i32) -> (i32, i32) {
    %c0_i32 = arith.constant 0 : i32
    %c0_i32_0 = arith.constant 0 : i32
    %c0_i32_1 = arith.constant 0 : i32
    return %c0_i32, %c0_i32_0 : i32, i32
  }
  func.func @transform_13(%arg0: i32) -> (i32, i32) {
    %c0_i32 = arith.constant 0 : i32
    %c0_i32_0 = arith.constant 0 : i32
    return %arg0, %c0_i32 : i32, i32
  }
  func.func @transform_14(%arg0: i32) -> (i32, i32) {
    %c0_i32 = arith.constant 0 : i32
    %c0_i32_0 = arith.constant 0 : i32
    return %arg0, %c0_i32 : i32, i32
  }
}

</mosaic_0001>

<llo_original>
// kernel: tpu_custom_call.1
$region0: #{tpu_custom_call.1}
  #allocation0 [shape = 'u32[]', space=smem, size = 0x4, offset = 0x4, fixed_abs, tag = 'smem constant byte address 0x4 - core index']
  #allocation1 [shape = 'u32[144,128]{1,0:T(1,128)}', space=vmem, size = 0x12000, scoped, tag = 'internal scratch']
  %s0 = inlined_call_operand.vmem [shape: f32[16,64], index: 0, kind: input, shape index: {}]
  %s1 = inlined_call_operand.vmem [shape: f32[64,48], index: 1, kind: input, shape index: {}]
  %s2 = inlined_call_operand.vmem [shape: f32[1,48], index: 2, kind: input, shape index: {}]
  %s3 = inlined_call_operand.vmem [shape: f32[48,32], index: 3, kind: input, shape index: {}]
  %s4 = inlined_call_operand.vmem [shape: f32[1,32], index: 4, kind: input, shape index: {}]
  %s5 = inlined_call_operand.vmem [shape: f32[32,16], index: 5, kind: input, shape index: {}]
  %s6 = inlined_call_operand.vmem [shape: f32[1,16], index: 6, kind: input, shape index: {}]
  %s7 = inlined_call_operand.vmem [shape: f32[1,16], index: 7, kind: input, shape index: {}]
  %s8 = inlined_call_operand.vmem [shape: f32[1,16], index: 8, kind: input, shape index: {}]
  %s9 = inlined_call_operand.vmem [shape: f32[32,16], index: 9, kind: input, shape index: {}]
  %s10 = inlined_call_operand.vmem [shape: f32[1,16], index: 10, kind: input, shape index: {}]
  %s11 = inlined_call_operand.vmem [shape: f32[1,16], index: 11, kind: input, shape index: {}]
  %s12 = inlined_call_operand.vmem [shape: f32[1,16], index: 12, kind: input, shape index: {}]
  %s13 = inlined_call_operand.hbm [shape: f32[16,16], index: 13, kind: output, shape index: {0}]
  %s14 = inlined_call_operand.hbm [shape: f32[16,16], index: 14, kind: output, shape index: {1}]
  %15 = xla_tuple %s13, %s14
  %s16 = sld [smem:[#allocation0]]
  $region70: #{tpu_custom_call.1} parent=0
    _
  %s18 = ssub.s32 1, %s16
  %s19 = scalar_select 0, %s18, %s16
  $region1: #{tpu_custom_call.1} parent=0
    #allocation2 [shape = 'u8[8192]{0}', space=vmem, size = 0x2000, scoped, tag = 'output window, operand 0, single buffered']
    #allocation3 [shape = 's32[1]{0}', space=sflag, size = 0x4, scoped, tag = 'scoped memory for tpu_custom_call.1']
    #allocation4 [shape = 'u8[8192]{0}', space=vmem, size = 0x2000, scoped, tag = 'output window, operand 1, single buffered']
    #allocation5 [shape = 's32[1]{0}', space=sflag, size = 0x4, scoped, tag = 'scoped memory for tpu_custom_call.1']
    %20 = vsyncpa [#allocation3], 0
    %21 = vsyncpa [#allocation5], 0
    // Predicated region
    $region2: #{tpu_custom_call.1} parent=1 // pred_check
      _
    $region3: #{tpu_custom_call.1} parent=1 // pred_check_branch
      %23 = sbr.rel (0) target = $region5
    $region4: #{tpu_custom_call.1} parent=1 // pred_region
      _
    $region5: #{tpu_custom_call.1} parent=1 // pred_fallthru
      _
    // Predicated region
    $region6: #{tpu_custom_call.1} parent=1 // pred_check
      _
    $region7: #{tpu_custom_call.1} parent=1 // pred_check_branch
      %25 = sbr.rel (0) target = $region9
    $region8: #{tpu_custom_call.1} parent=1 // pred_region
      _
    $region9: #{tpu_custom_call.1} parent=1 // pred_fallthru
      _
    // Predicated region
    $region10: #{tpu_custom_call.1} parent=1 // pred_check
      _
    $region11: #{tpu_custom_call.1} parent=1 // pred_check_branch
      %27 = sbr.rel (0) target = $region13
    $region12: #{tpu_custom_call.1} parent=1 // pred_region
      _
    $region13: #{tpu_custom_call.1} parent=1 // pred_fallthru
      _
    // Predicated region
    $region14: #{tpu_custom_call.1} parent=1 // pred_check
      _
    $region15: #{tpu_custom_call.1} parent=1 // pred_check_branch
      %29 = sbr.rel (0) target = $region17
    $region16: #{tpu_custom_call.1} parent=1 // pred_region
      _
    $region17: #{tpu_custom_call.1} parent=1 // pred_fallthru
      _
    // Predicated region
    $region18: #{tpu_custom_call.1} parent=1 // pred_check
      _
    $region19: #{tpu_custom_call.1} parent=1 // pred_check_branch
      %31 = sbr.rel (0) target = $region21
    $region20: #{tpu_custom_call.1} parent=1 // pred_region
      _
    $region21: #{tpu_custom_call.1} parent=1 // pred_fallthru
      _
    // Predicated region
    $region22: #{tpu_custom_call.1} parent=1 // pred_check
      _
    $region23: #{tpu_custom_call.1} parent=1 // pred_check_branch
      %33 = sbr.rel (0) target = $region25
    $region24: #{tpu_custom_call.1} parent=1 // pred_region
      _
    $region25: #{tpu_custom_call.1} parent=1 // pred_fallthru
      _
    // Predicated region
    $region26: #{tpu_custom_call.1} parent=1 // pred_check
      _
    $region27: #{tpu_custom_call.1} parent=1 // pred_check_branch
      %35 = sbr.rel (0) target = $region29
    $region28: #{tpu_custom_call.1} parent=1 // pred_region
      _
    $region29: #{tpu_custom_call.1} parent=1 // pred_fallthru
      _
    // Predicated region
    $region30: #{tpu_custom_call.1} parent=1 // pred_check
      _
    $region31: #{tpu_custom_call.1} parent=1 // pred_check_branch
      %37 = sbr.rel (0) target = $region33
    $region32: #{tpu_custom_call.1} parent=1 // pred_region
      _
    $region33: #{tpu_custom_call.1} parent=1 // pred_fallthru
      _
    // Predicated region
    $region34: #{tpu_custom_call.1} parent=1 // pred_check
      _
    $region35: #{tpu_custom_call.1} parent=1 // pred_check_branch
      %39 = sbr.rel (0) target = $region37
    $region36: #{tpu_custom_call.1} parent=1 // pred_region
      _
    $region37: #{tpu_custom_call.1} parent=1 // pred_fallthru
      _
    // Predicated region
    $region38: #{tpu_custom_call.1} parent=1 // pred_check
      _
    $region39: #{tpu_custom_call.1} parent=1 // pred_check_branch
      %41 = sbr.rel (0) target = $region41
    $region40: #{tpu_custom_call.1} parent=1 // pred_region
      _
    $region41: #{tpu_custom_call.1} parent=1 // pred_fallthru
      _
    // Predicated region
    $region42: #{tpu_custom_call.1} parent=1 // pred_check
      _
    $region43: #{tpu_custom_call.1} parent=1 // pred_check_branch
      %43 = sbr.rel (0) target = $region45
    $region44: #{tpu_custom_call.1} parent=1 // pred_region
      _
    $region45: #{tpu_custom_call.1} parent=1 // pred_fallthru
      _
    // Predicated region
    $region46: #{tpu_custom_call.1} parent=1 // pred_check
      _
    $region47: #{tpu_custom_call.1} parent=1 // pred_check_branch
      %45 = sbr.rel (0) target = $region49
    $region48: #{tpu_custom_call.1} parent=1 // pred_region
      _
    $region49: #{tpu_custom_call.1} parent=1 // pred_fallthru
      _
    // Predicated region
    $region50: #{tpu_custom_call.1} parent=1 // pred_check
      _
    $region51: #{tpu_custom_call.1} parent=1 // pred_check_branch
      %47 = sbr.rel (0) target = $region53
    $region52: #{tpu_custom_call.1} parent=1 // pred_region
      _
    $region53: #{tpu_custom_call.1} parent=1 // pred_fallthru
      _
    %v48 = vld [vmem:[%s0] sm:$0xff]
    %v49 = vld [vmem:[%s0 + $0x8] sm:$0xff]
    %v50 = vld [vmem:[%s1] sm:$0xff]
    %v51 = vld [vmem:[%s1 + $0x8] sm:$0xff]
    %v52 = vld [vmem:[%s1 + $0x10] sm:$0xff]
    %v53 = vld [vmem:[%s1 + $0x18] sm:$0xff]
    %v54 = vld [vmem:[%s1 + $0x20] sm:$0xff]
    %v55 = vld [vmem:[%s1 + $0x28] sm:$0xff]
    %v56 = vld [vmem:[%s1 + $0x30] sm:$0xff]
    %v57 = vld [vmem:[%s1 + $0x38] sm:$0xff]
    %v58 = vld [vmem:[%s2] sm:$0x1]
    %v60 = vlaneseq
    %v61 = vshrl.u32 %v60, 7
    %v62 = vsub.s32 0, %v61
    %v63 = vrot.slane %v58, %v62
    %vm65 = vcmask 523264
    %v67 = vsel %vm65, %v48, 0
    %v70 = vsel %vm65, %v49, 0
    %72 = vmatprep.subr.mxu0 0.0
    %73 = vmatpush1.msra.mxu0 %v50
    %74 = vmatprep.subr.mxu0 0.0
    %75 = vmatpush1.msra.mxu0 %v51
    %76 = vmatprep.subr.mxu0 0.0
    %77 = vmatpush1.msra.mxu0 %v52
    %78 = vmatprep.subr.mxu0 0.0
    %79 = vmatpush1.msra.mxu0 %v53
    %80 = vmatprep.subr.mxu0 0.0
    %81 = vmatpush1.msra.mxu0 %v54
    %82 = vmatprep.subr.mxu0 0.0
    %83 = vmatpush1.msra.mxu0 %v55
    %84 = vmatprep.subr.mxu0 0.0
    %85 = vmatpush1.msra.mxu0 %v56
    %86 = vmatprep.subr.mxu0 0.0
    %87 = vmatpush1.msra.mxu0 %v57
    %88 = vmatprep.subr.mxu0 0.0
    %89 = vmatpush1.msra.mxu0 0.0
    %90 = vmatprep.subr.mxu0 0.0
    %91 = vmatpush1.msra.mxu0 0.0
    %92 = vmatprep.subr.mxu0 0.0
    %93 = vmatpush1.msra.mxu0 0.0
    %94 = vmatprep.subr.mxu0 0.0
    %95 = vmatpush1.msra.mxu0 0.0
    %96 = vmatprep.subr.mxu0 0.0
    %97 = vmatpush1.msra.mxu0 0.0
    %98 = vmatprep.subr.mxu0 0.0
    %99 = vmatpush1.msra.mxu0 0.0
    %100 = vmatprep.subr.mxu0 0.0
    %101 = vmatpush1.msra.mxu0 0.0
    %102 = vmatprep.subr.mxu0 0.0
    %103 = vmatpush1.msra.mxu0 0.0
    %104 = vmatprep.subr.mxu0 0.0
    %105 = vmatpush1.msra.mxu0 0.0
    %106 = vmatprep.subr.mxu0 0.0
    %107 = vmatpush1.msra.mxu0 0.0
    %108 = vmatprep.subr.mxu0 0.0
    %109 = vmatpush1.msra.mxu0 0.0
    %110 = vmatprep.subr.mxu0 0.0
    %111 = vmatpush1.msra.mxu0 0.0
    %112 = vmatprep.subr.mxu0 0.0
    %113 = vmatpush1.msra.mxu0 0.0
    %114 = vmatprep.subr.mxu0 0.0
    %115 = vmatpush1.msra.mxu0 0.0
    %116 = vmatprep.subr.mxu0 0.0
    %117 = vmatpush1.msra.mxu0 0.0
    %118 = vmatprep.subr.mxu0 0.0
    %119 = vmatpush1.msra.mxu0 0.0
    %120 = vmatprep.subr.mxu0 0.0
    %121 = vmatpush1.msra.mxu0 0.0
    %122 = vmatprep.subr.mxu0 0.0
    %123 = vmatpush1.msra.mxu0 0.0
    %124 = vmatprep.subr.mxu0 0.0
    %125 = vmatpush1.msra.mxu0 0.0
    %126 = vmatprep.subr.mxu0 0.0
    %127 = vmatpush1.msra.mxu0 0.0
    %128 = vmatprep.subr.mxu0 0.0
    %129 = vmatpush1.msra.mxu0 0.0
    %130 = vmatprep.subr.mxu0 0.0
    %131 = vmatpush1.msra.mxu0 0.0
    %132 = vmatprep.subr.mxu0 0.0
    %133 = vmatpush1.msra.mxu0 0.0
    %134 = vmatprep.subr.mxu0 0.0
    %135 = vmatpush1.msra.mxu0 0.0
    %136 = vmatprep.mubr.f32.mxu0 0.0
    %137 = vmatmul.mubr.f32.gmra.mrb[0].mxu0 %v67
    %v138 = vpop.f32.mrb[0].mxu0
    %v139 = vadd.f32 %v63, %v138
    %v140 = vpop.f32.mrb[0].mxu0
    %141 = vmatprep.mubr.f32.mxu0 0.0
    %142 = vmatmul.mubr.f32.gmra.mrb[0].mxu0 %v70
    %v143 = vpop.f32.mrb[0].mxu0
    %v144 = vadd.f32 %v63, %v143
    %v145 = vpop.f32.mrb[0].mxu0
    %146 = vdwg.mxu0
    %vm147 = vcmp.gt.f32.partialorder %v139, 20.0
    %vm148 = vcmp.gt.f32.partialorder %v144, 20.0
    %v149 = vmin.f32 %v139, 20.0
    %v150 = vmin.f32 %v144, 20.0
    %v151 = vmul.f32 %v149, 1.442695
    %v152 = vpow.pop %v151
    %v153 = vmul.f32 %v150, 1.442695
    %v154 = vpow.pop %v153
    %v155 = vadd.f32 %v152, 1.0
    %v156 = vlog2.pop %v155
    %v157 = vmul.f32 %v156, 0.6931472
    %v158 = vmul.f32 -0.5, %v152
    %v159 = vadd.f32 %v158, 1.0
    %v160 = vmul.f32 %v159, %v152
    %v161 = vand.u32 2147483647, %v152
    %vm162 = vcmp.lt.f32.partialorder %v161, 0.0004427343
    %v163 = vsel %vm162, %v160, %v157
    %v164 = vadd.f32 %v154, 1.0
    %v165 = vlog2.pop %v164
    %v166 = vmul.f32 %v165, 0.6931472
    %v167 = vmul.f32 -0.5, %v154
    %v168 = vadd.f32 %v167, 1.0
    %v169 = vmul.f32 %v168, %v154
    %v170 = vand.u32 2147483647, %v154
    %vm171 = vcmp.lt.f32.partialorder %v170, 0.0004427343
    %v172 = vsel %vm171, %v169, %v166
    %v173 = vsel %vm147, %v139, %v163
    %v174 = vsel %vm148, %v144, %v172
    %v175 = vld [vmem:[%s3] sm:$0xff]
    %v176 = vld [vmem:[%s3 + $0x8] sm:$0xff]
    %v177 = vld [vmem:[%s3 + $0x10] sm:$0xff]
    %v178 = vld [vmem:[%s3 + $0x18] sm:$0xff]
    %v179 = vld [vmem:[%s3 + $0x20] sm:$0xff]
    %v180 = vld [vmem:[%s3 + $0x28] sm:$0xff]
    %v181 = vld [vmem:[%s4] sm:$0x1]
    %v183 = vlaneseq
    %v184 = vshrl.u32 %v183, 7
    %v185 = vsub.s32 0, %v184
    %v186 = vrot.slane %v181, %v185
    %vm188 = vcmask 392192
    %v190 = vsel %vm188, %v173, 0
    %v193 = vsel %vm188, %v174, 0
    %195 = vmatprep.subr.mxu0 0.0
    %196 = vmatpush1.msra.mxu0 %v175
    %197 = vmatprep.subr.mxu0 0.0
    %198 = vmatpush1.msra.mxu0 %v176
    %199 = vmatprep.subr.mxu0 0.0
    %200 = vmatpush1.msra.mxu0 %v177
    %201 = vmatprep.subr.mxu0 0.0
    %202 = vmatpush1.msra.mxu0 %v178
    %203 = vmatprep.subr.mxu0 0.0
    %204 = vmatpush1.msra.mxu0 %v179
    %205 = vmatprep.subr.mxu0 0.0
    %206 = vmatpush1.msra.mxu0 %v180
    %207 = vmatprep.subr.mxu0 0.0
    %208 = vmatpush1.msra.mxu0 0.0
    %209 = vmatprep.subr.mxu0 0.0
    %210 = vmatpush1.msra.mxu0 0.0
    %211 = vmatprep.subr.mxu0 0.0
    %212 = vmatpush1.msra.mxu0 0.0
    %213 = vmatprep.subr.mxu0 0.0
    %214 = vmatpush1.msra.mxu0 0.0
    %215 = vmatprep.subr.mxu0 0.0
    %216 = vmatpush1.msra.mxu0 0.0
    %217 = vmatprep.subr.mxu0 0.0
    %218 = vmatpush1.msra.mxu0 0.0
    %219 = vmatprep.subr.mxu0 0.0
    %220 = vmatpush1.msra.mxu0 0.0
    %221 = vmatprep.subr.mxu0 0.0
    %222 = vmatpush1.msra.mxu0 0.0
    %223 = vmatprep.subr.mxu0 0.0
    %224 = vmatpush1.msra.mxu0 0.0
    %225 = vmatprep.subr.mxu0 0.0
    %226 = vmatpush1.msra.mxu0 0.0
    %227 = vmatprep.subr.mxu0 0.0
    %228 = vmatpush1.msra.mxu0 0.0
    %229 = vmatprep.subr.mxu0 0.0
    %230 = vmatpush1.msra.mxu0 0.0
    %231 = vmatprep.subr.mxu0 0.0
    %232 = vmatpush1.msra.mxu0 0.0
    %233 = vmatprep.subr.mxu0 0.0
    %234 = vmatpush1.msra.mxu0 0.0
    %235 = vmatprep.subr.mxu0 0.0
    %236 = vmatpush1.msra.mxu0 0.0
    %237 = vmatprep.subr.mxu0 0.0
    %238 = vmatpush1.msra.mxu0 0.0
    %239 = vmatprep.subr.mxu0 0.0
    %240 = vmatpush1.msra.mxu0 0.0
    %241 = vmatprep.subr.mxu0 0.0
    %242 = vmatpush1.msra.mxu0 0.0
    %243 = vmatprep.subr.mxu0 0.0
    %244 = vmatpush1.msra.mxu0 0.0
    %245 = vmatprep.subr.mxu0 0.0
    %246 = vmatpush1.msra.mxu0 0.0
    %247 = vmatprep.subr.mxu0 0.0
    %248 = vmatpush1.msra.mxu0 0.0
    %249 = vmatprep.subr.mxu0 0.0
    %250 = vmatpush1.msra.mxu0 0.0
    %251 = vmatprep.subr.mxu0 0.0
    %252 = vmatpush1.msra.mxu0 0.0
    %253 = vmatprep.subr.mxu0 0.0
    %254 = vmatpush1.msra.mxu0 0.0
    %255 = vmatprep.subr.mxu0 0.0
    %256 = vmatpush1.msra.mxu0 0.0
    %257 = vmatprep.subr.mxu0 0.0
    %258 = vmatpush1.msra.mxu0 0.0
    %259 = vmatprep.mubr.f32.mxu0 0.0
    %260 = vmatmul.mubr.f32.gmra.mrb[0].mxu0 %v190
    %v261 = vpop.f32.mrb[0].mxu0
    %v262 = vadd.f32 %v186, %v261
    %v263 = vpop.f32.mrb[0].mxu0
    %264 = vmatprep.mubr.f32.mxu0 0.0
    %265 = vmatmul.mubr.f32.gmra.mrb[0].mxu0 %v193
    %v266 = vpop.f32.mrb[0].mxu0
    %v267 = vadd.f32 %v186, %v266
    %v268 = vpop.f32.mrb[0].mxu0
    %269 = vdwg.mxu0
    %vm270 = vcmp.gt.f32.partialorder %v262, 20.0
    %vm271 = vcmp.gt.f32.partialorder %v267, 20.0
    %v272 = vmin.f32 %v262, 20.0
    %v273 = vmin.f32 %v267, 20.0
    %v274 = vmul.f32 %v272, 1.442695
    %v275 = vpow.pop %v274
    %v276 = vmul.f32 %v273, 1.442695
    %v277 = vpow.pop %v276
    %v278 = vadd.f32 %v275, 1.0
    %v279 = vlog2.pop %v278
    %v280 = vmul.f32 %v279, 0.6931472
    %v281 = vmul.f32 -0.5, %v275
    %v282 = vadd.f32 %v281, 1.0
    %v283 = vmul.f32 %v282, %v275
    %v284 = vand.u32 2147483647, %v275
    %vm285 = vcmp.lt.f32.partialorder %v284, 0.0004427343
    %v286 = vsel %vm285, %v283, %v280
    %v287 = vadd.f32 %v277, 1.0
    %v288 = vlog2.pop %v287
    %v289 = vmul.f32 %v288, 0.6931472
    %v290 = vmul.f32 -0.5, %v277
    %v291 = vadd.f32 %v290, 1.0
    %v292 = vmul.f32 %v291, %v277
    %v293 = vand.u32 2147483647, %v277
    %vm294 = vcmp.lt.f32.partialorder %v293, 0.0004427343
    %v295 = vsel %vm294, %v292, %v289
    %v296 = vsel %vm270, %v262, %v286
    %v297 = vsel %vm271, %v267, %v295
    %v298 = vld [vmem:[%s5] sm:$0xff]
    %v299 = vld [vmem:[%s5 + $0x8] sm:$0xff]
    %v300 = vld [vmem:[%s5 + $0x10] sm:$0xff]
    %v301 = vld [vmem:[%s5 + $0x18] sm:$0xff]
    %v302 = vld [vmem:[%s6] sm:$0x1]
    %v304 = vlaneseq
    %v305 = vshrl.u32 %v304, 7
    %v306 = vsub.s32 0, %v305
    %v307 = vrot.slane %v302, %v306
    %vm309 = vcmask 261120
    %v311 = vsel %vm309, %v296, 0
    %v314 = vsel %vm309, %v297, 0
    %316 = vmatprep.subr.mxu0 0.0
    %317 = vmatpush1.msra.mxu0 %v298
    %318 = vmatprep.subr.mxu0 0.0
    %319 = vmatpush1.msra.mxu0 %v299
    %320 = vmatprep.subr.mxu0 0.0
    %321 = vmatpush1.msra.mxu0 %v300
    %322 = vmatprep.subr.mxu0 0.0
    %323 = vmatpush1.msra.mxu0 %v301
    %324 = vmatprep.subr.mxu0 0.0
    %325 = vmatpush1.msra.mxu0 0.0
    %326 = vmatprep.subr.mxu0 0.0
    %327 = vmatpush1.msra.mxu0 0.0
    %328 = vmatprep.subr.mxu0 0.0
    %329 = vmatpush1.msra.mxu0 0.0
    %330 = vmatprep.subr.mxu0 0.0
    %331 = vmatpush1.msra.mxu0 0.0
    %332 = vmatprep.subr.mxu0 0.0
    %333 = vmatpush1.msra.mxu0 0.0
    %334 = vmatprep.subr.mxu0 0.0
    %335 = vmatpush1.msra.mxu0 0.0
    %336 = vmatprep.subr.mxu0 0.0
    %337 = vmatpush1.msra.mxu0 0.0
    %338 = vmatprep.subr.mxu0 0.0
    %339 = vmatpush1.msra.mxu0 0.0
    %340 = vmatprep.subr.mxu0 0.0
    %341 = vmatpush1.msra.mxu0 0.0
    %342 = vmatprep.subr.mxu0 0.0
    %343 = vmatpush1.msra.mxu0 0.0
    %344 = vmatprep.subr.mxu0 0.0
    %345 = vmatpush1.msra.mxu0 0.0
    %346 = vmatprep.subr.mxu0 0.0
    %347 = vmatpush1.msra.mxu0 0.0
    %348 = vmatprep.subr.mxu0 0.0
    %349 = vmatpush1.msra.mxu0 0.0
    %350 = vmatprep.subr.mxu0 0.0
    %351 = vmatpush1.msra.mxu0 0.0
    %352 = vmatprep.subr.mxu0 0.0
    %353 = vmatpush1.msra.mxu0 0.0
    %354 = vmatprep.subr.mxu0 0.0
    %355 = vmatpush1.msra.mxu0 0.0
    %356 = vmatprep.subr.mxu0 0.0
    %357 = vmatpush1.msra.mxu0 0.0
    %358 = vmatprep.subr.mxu0 0.0
    %359 = vmatpush1.msra.mxu0 0.0
    %360 = vmatprep.subr.mxu0 0.0
    %361 = vmatpush1.msra.mxu0 0.0
    %362 = vmatprep.subr.mxu0 0.0
    %363 = vmatpush1.msra.mxu0 0.0
    %364 = vmatprep.subr.mxu0 0.0
    %365 = vmatpush1.msra.mxu0 0.0
    %366 = vmatprep.subr.mxu0 0.0
    %367 = vmatpush1.msra.mxu0 0.0
    %368 = vmatprep.subr.mxu0 0.0
    %369 = vmatpush1.msra.mxu0 0.0
    %370 = vmatprep.subr.mxu0 0.0
    %371 = vmatpush1.msra.mxu0 0.0
    %372 = vmatprep.subr.mxu0 0.0
    %373 = vmatpush1.msra.mxu0 0.0
    %374 = vmatprep.subr.mxu0 0.0
    %375 = vmatpush1.msra.mxu0 0.0
    %376 = vmatprep.subr.mxu0 0.0
    %377 = vmatpush1.msra.mxu0 0.0
    %378 = vmatprep.subr.mxu0 0.0
    %379 = vmatpush1.msra.mxu0 0.0
    %380 = vmatprep.mubr.f32.mxu0 0.0
    %381 = vmatmul.mubr.f32.gmra.mrb[0].mxu0 %v311
    %v382 = vpop.f32.mrb[0].mxu0
    %v383 = vadd.f32 %v307, %v382
    %v384 = vpop.f32.mrb[0].mxu0
    %385 = vmatprep.mubr.f32.mxu0 0.0
    %386 = vmatmul.mubr.f32.gmra.mrb[0].mxu0 %v314
    %v387 = vpop.f32.mrb[0].mxu0
    %v388 = vadd.f32 %v307, %v387
    %v389 = vpop.f32.mrb[0].mxu0
    %390 = vdwg.mxu0
    %v391 = vld [vmem:[%s9] sm:$0xff]
    %v392 = vld [vmem:[%s9 + $0x8] sm:$0xff]
    %v393 = vld [vmem:[%s9 + $0x10] sm:$0xff]
    %v394 = vld [vmem:[%s9 + $0x18] sm:$0xff]
    %v395 = vld [vmem:[%s10] sm:$0x1]
    %v397 = vlaneseq
    %v398 = vshrl.u32 %v397, 7
    %v399 = vsub.s32 0, %v398
    %v400 = vrot.slane %v395, %v399
    %402 = vmatprep.subr.mxu0 0.0
    %403 = vmatpush1.msra.mxu0 %v391
    %404 = vmatprep.subr.mxu0 0.0
    %405 = vmatpush1.msra.mxu0 %v392
    %406 = vmatprep.subr.mxu0 0.0
    %407 = vmatpush1.msra.mxu0 %v393
    %408 = vmatprep.subr.mxu0 0.0
    %409 = vmatpush1.msra.mxu0 %v394
    %410 = vmatprep.subr.mxu0 0.0
    %411 = vmatpush1.msra.mxu0 0.0
    %412 = vmatprep.subr.mxu0 0.0
    %413 = vmatpush1.msra.mxu0 0.0
    %414 = vmatprep.subr.mxu0 0.0
    %415 = vmatpush1.msra.mxu0 0.0
    %416 = vmatprep.subr.mxu0 0.0
    %417 = vmatpush1.msra.mxu0 0.0
    %418 = vmatprep.subr.mxu0 0.0
    %419 = vmatpush1.msra.mxu0 0.0
    %420 = vmatprep.subr.mxu0 0.0
    %421 = vmatpush1.msra.mxu0 0.0
    %422 = vmatprep.subr.mxu0 0.0
    %423 = vmatpush1.msra.mxu0 0.0
    %424 = vmatprep.subr.mxu0 0.0
    %425 = vmatpush1.msra.mxu0 0.0
    %426 = vmatprep.subr.mxu0 0.0
    %427 = vmatpush1.msra.mxu0 0.0
    %428 = vmatprep.subr.mxu0 0.0
    %429 = vmatpush1.msra.mxu0 0.0
    %430 = vmatprep.subr.mxu0 0.0
    %431 = vmatpush1.msra.mxu0 0.0
    %432 = vmatprep.subr.mxu0 0.0
    %433 = vmatpush1.msra.mxu0 0.0
    %434 = vmatprep.subr.mxu0 0.0
    %435 = vmatpush1.msra.mxu0 0.0
    %436 = vmatprep.subr.mxu0 0.0
    %437 = vmatpush1.msra.mxu0 0.0
    %438 = vmatprep.subr.mxu0 0.0
    %439 = vmatpush1.msra.mxu0 0.0
    %440 = vmatprep.subr.mxu0 0.0
    %441 = vmatpush1.msra.mxu0 0.0
    %442 = vmatprep.subr.mxu0 0.0
    %443 = vmatpush1.msra.mxu0 0.0
    %444 = vmatprep.subr.mxu0 0.0
    %445 = vmatpush1.msra.mxu0 0.0
    %446 = vmatprep.subr.mxu0 0.0
    %447 = vmatpush1.msra.mxu0 0.0
    %448 = vmatprep.subr.mxu0 0.0
    %449 = vmatpush1.msra.mxu0 0.0
    %450 = vmatprep.subr.mxu0 0.0
    %451 = vmatpush1.msra.mxu0 0.0
    %452 = vmatprep.subr.mxu0 0.0
    %453 = vmatpush1.msra.mxu0 0.0
    %454 = vmatprep.subr.mxu0 0.0
    %455 = vmatpush1.msra.mxu0 0.0
    %456 = vmatprep.subr.mxu0 0.0
    %457 = vmatpush1.msra.mxu0 0.0
    %458 = vmatprep.subr.mxu0 0.0
    %459 = vmatpush1.msra.mxu0 0.0
    %460 = vmatprep.subr.mxu0 0.0
    %461 = vmatpush1.msra.mxu0 0.0
    %462 = vmatprep.subr.mxu0 0.0
    %463 = vmatpush1.msra.mxu0 0.0
    %464 = vmatprep.subr.mxu0 0.0
    %465 = vmatpush1.msra.mxu0 0.0
    %466 = vmatprep.mubr.f32.mxu0 0.0
    %467 = vmatmul.mubr.f32.gmra.mrb[0].mxu0 %v311
    %v468 = vpop.f32.mrb[0].mxu0
    %v469 = vadd.f32 %v400, %v468
    %v470 = vpop.f32.mrb[0].mxu0
    %471 = vmatprep.mubr.f32.mxu0 0.0
    %472 = vmatmul.mubr.f32.gmra.mrb[0].mxu0 %v314
    %v473 = vpop.f32.mrb[0].mxu0
    %v474 = vadd.f32 %v400, %v473
    %v475 = vpop.f32.mrb[0].mxu0
    %476 = vdwg.mxu0
    %v477 = vld [vmem:[%s7] sm:$0x1]
    %v479 = vlaneseq
    %v480 = vshrl.u32 %v479, 7
    %v481 = vsub.s32 0, %v480
    %v482 = vrot.slane %v477, %v481
    %v484 = vmul.f32 %v383, %v482
    %v485 = vmul.f32 %v388, %v482
    %v486 = vld [vmem:[%s8] sm:$0x1]
    %v488 = vlaneseq
    %v489 = vshrl.u32 %v488, 7
    %v490 = vsub.s32 0, %v489
    %v491 = vrot.slane %v486, %v490
    %v493 = vadd.f32 %v484, %v491
    %v494 = vadd.f32 %v485, %v491
    %vm495 = vcmask 130048
    %496 = vst.msk [vmem:[#allocation2] sm:$0xff] %vm495, %v493
    %497 = vst.msk [vmem:[#allocation2 + $0x8] sm:$0xff] %vm495, %v494
    %v498 = vld [vmem:[%s11] sm:$0x1]
    %v500 = vlaneseq
    %v501 = vshrl.u32 %v500, 7
    %v502 = vsub.s32 0, %v501
    %v503 = vrot.slane %v498, %v502
    %v505 = vmul.f32 %v469, %v503
    %v506 = vmul.f32 %v474, %v503
    %v507 = vld [vmem:[%s12] sm:$0x1]
    %v509 = vlaneseq
    %v510 = vshrl.u32 %v509, 7
    %v511 = vsub.s32 0, %v510
    %v512 = vrot.slane %v507, %v511
    %v514 = vadd.f32 %v505, %v512
    %v515 = vadd.f32 %v506, %v512
    %516 = vst.msk [vmem:[#allocation4] sm:$0xff] %vm495, %v514
    %517 = vst.msk [vmem:[#allocation4 + $0x8] sm:$0xff] %vm495, %v515
    // Predicated region
    $region54: #{tpu_custom_call.1} parent=1 // pred_check
      _
    $region55: #{tpu_custom_call.1} parent=1 // pred_check_branch
      %519 = sbr.rel (0) target = $region57
    $region56: #{tpu_custom_call.1} parent=1 // pred_region
      %s521 = ssub.s32 256, 256
      %522 = vsyncadd [#allocation3], %s521
      %s523 = sshll.u32 [#allocation2], 4
      %s524 = int_to_ptr.vmem [resolvable:$true] %s523
      %529 = dma.vmem_to_hbm [thread:$0]  %s524, 256, %s13, [#allocation3], 128, 128, 8
    $region57: #{tpu_custom_call.1} parent=1 // pred_fallthru
      _
    // Predicated region
    $region58: #{tpu_custom_call.1} parent=1 // pred_check
      _
    $region59: #{tpu_custom_call.1} parent=1 // pred_check_branch
      %531 = sbr.rel (0) target = $region61
    $region60: #{tpu_custom_call.1} parent=1 // pred_region
      %s533 = ssub.s32 256, 256
      %534 = vsyncadd [#allocation5], %s533
      %s535 = sshll.u32 [#allocation4], 4
      %s536 = int_to_ptr.vmem [resolvable:$true] %s535
      %541 = dma.vmem_to_hbm [thread:$0]  %s536, 256, %s14, [#allocation5], 128, 128, 8
    $region61: #{tpu_custom_call.1} parent=1 // pred_fallthru
      _
    // Predicated region
    $region62: #{tpu_custom_call.1} parent=1 // pred_check
      _
    $region63: #{tpu_custom_call.1} parent=1 // pred_check_branch
      %543 = sbr.rel (0) target = $region65
    $region64: #{tpu_custom_call.1} parent=1 // pred_region
      %544 = dma.done [#allocation3], 256
    $region65: #{tpu_custom_call.1} parent=1 // pred_fallthru
      _
    // Predicated region
    $region66: #{tpu_custom_call.1} parent=1 // pred_check
      _
    $region67: #{tpu_custom_call.1} parent=1 // pred_check_branch
      %546 = sbr.rel (0) target = $region69
    $region68: #{tpu_custom_call.1} parent=1 // pred_region
      %547 = dma.done [#allocation5], 256
    $region69: #{tpu_custom_call.1} parent=1 // pred_fallthru
      _
    %548 = vsyncpa [#allocation3], 1
    %549 = vsyncpa [#allocation5], 1

</llo_original>
